<compile_context>
chip_gen: v6e
topology: v6e:2x2x1
jax: 0.10.0
libtpu: 0.0.40
codegen_flags: <defaults>
</compile_context>

<pallas_src>
import functools

import jax
import jax.numpy as jnp
from jax.experimental import pallas as pl
from jax.experimental.pallas import tpu as pltpu


def _round_up(x, m):
    return (x + m - 1) // m * m


def _bert_fc_head_kernel(h_ref, w1_ref, b1_ref, w2_ref, b2_ref, o_ref,
                         *, hidden, fuse_concat):
    # One batch tile of last_hidden_state: (TB, S, H).
    h = h_ref[...].astype(jnp.float32)

    sent = h[:, 0, :]                       # CLS token            (TB, H)
    maxp = jnp.max(h, axis=1)               # MaxPool1d(max_seq)   (TB, H)
    avgp = jnp.mean(h, axis=1)              # AvgPool1d(max_seq)   (TB, H)
    # NOTE: pooling intentionally covers the full sequence (incl. padded
    # positions), exactly like nn.MaxPool1d/AvgPool1d in the PyTorch Bert_Fc.

    if fuse_concat:
        # H % 128 == 0: lane-dense concat -> one K=3H MXU pass.
        feat = jnp.concatenate([maxp, avgp, sent], axis=-1)        # (TB, 3H)
        z = jnp.dot(feat, w1_ref[...], preferred_element_type=jnp.float32)
    else:
        # Small / unaligned H: split matmul (algebraically identical to the
        # concat form) avoids a sub-128-lane concatenation.
        H = hidden
        z = (jnp.dot(maxp, w1_ref[0:H, :], preferred_element_type=jnp.float32)
             + jnp.dot(avgp, w1_ref[H:2 * H, :], preferred_element_type=jnp.float32)
             + jnp.dot(sent, w1_ref[2 * H:3 * H, :], preferred_element_type=jnp.float32))

    z = jnp.tanh(z + b1_ref[...])                                  # (TB, H) f32
    out = jnp.dot(z, w2_ref[...], preferred_element_type=jnp.float32) + b2_ref[...]
    o_ref[...] = out.astype(o_ref.dtype)                           # (TB, Cp)


def bert_fc_head(last_hidden, w1, b1, w2, b2, *, batch_tile=None,
                 input_dtype=None):
    """Fused pooling + concat + linear1 + tanh + linear2 head.

    last_hidden: (B, S, H) ; w1: (3H, H) ; b1: (H,) ; w2: (H, C) ; b2: (C,).
    input_dtype=jnp.bfloat16 halves the HBM read traffic of the dominant
    B*S*H load (compute stays in f32 inside the kernel).
    """
    B, S, H = last_hidden.shape
    C = w2.shape[1]
    assert w1.shape == (3 * H, H) and b1.shape == (H,) and b2.shape == (C,)

    if input_dtype is not None:
        last_hidden = last_hidden.astype(input_dtype)
    itemsize = jnp.dtype(last_hidden.dtype).itemsize

    # --- batch tile: biggest multiple of 8 whose double-buffered input tiles
    # stay under ~24 MiB of VMEM (safe on v5e/v6e/v7x scoped defaults).
    if batch_tile is None:
        per_row = S * H * itemsize
        batch_tile = max(8, ((24 << 20) // (2 * per_row)) // 8 * 8)
        batch_tile = min(batch_tile, 256)
    batch_tile = int(min(batch_tile, _round_up(B, 8)))
    B_pad = _round_up(B, batch_tile)

    # --- lane-dense output: pad n_class up to 128 lanes, slice back later.
    C_pad = _round_up(C, 128)

    if B_pad != B:
        last_hidden = jnp.pad(last_hidden, ((0, B_pad - B), (0, 0), (0, 0)))
    w2_p = jnp.pad(w2, ((0, 0), (0, C_pad - C)))
    b2_p = jnp.pad(b2, ((0, C_pad - C),)).reshape(1, C_pad)
    b1_2d = b1.reshape(1, H)

    grid = (B_pad // batch_tile,)
    fuse_concat = (H % 128 == 0)
    kernel = functools.partial(_bert_fc_head_kernel, hidden=H,
                               fuse_concat=fuse_concat)

    # VMEM budget: double-buffered input tile + resident params + output tile.
    weight_bytes = (w1.size + b1_2d.size + w2_p.size + b2_p.size) * 4
    vmem_bytes = (2 * batch_tile * S * H * itemsize
                  + 2 * weight_bytes
                  + 2 * batch_tile * C_pad * 4)
    vmem_limit = int(min(max(2 * vmem_bytes, 4 << 20), 64 << 20))

    cost = pl.CostEstimate(
        flops=int(2 * B_pad * (3 * H * H + H * C_pad) + 2 * B_pad * S * H),
        transcendentals=int(B_pad * H),
        bytes_accessed=int(B_pad * S * H * itemsize + weight_bytes
                           + B_pad * C_pad * 4),
    )

    const2 = lambda i: (0, 0)
    out_pad = pl.pallas_call(
        kernel,
        out_shape=jax.ShapeDtypeStruct((B_pad, C_pad), jnp.float32),
        grid=grid,
        in_specs=[
            pl.BlockSpec((batch_tile, S, H), lambda i: (i, 0, 0)),  # batch-tiled
            pl.BlockSpec((3 * H, H), const2),   # weights stay resident:
            pl.BlockSpec((1, H), const2),       # constant block index => no
            pl.BlockSpec((H, C_pad), const2),   # re-DMA across grid steps.
            pl.BlockSpec((1, C_pad), const2),
        ],
        out_specs=pl.BlockSpec((batch_tile, C_pad), lambda i: (i, 0)),
        compiler_params=pltpu.CompilerParams(
            dimension_semantics=("parallel",),   # shard batch across v7x TCs
            vmem_limit_bytes=vmem_limit,
        ),
        cost_estimate=cost,
    )(last_hidden, w1, b1_2d, w2_p, b2_p)

    return out_pad[:B, :C]


def surrogate_bert_encoder(x, mask, token_type_ids, word_emb, seg_emb, pos_emb):
    """Deterministic stand-in for BertModel(...).last_hidden_state (plain JAX glue)."""
    h = word_emb[x] + seg_emb[token_type_ids] + pos_emb[None, :x.shape[1], :]
    h = h * mask[..., None].astype(h.dtype)
    return h.astype(jnp.float32)


def reference_head(last_hidden, w1, b1, w2, b2):
    sent = last_hidden[:, 0, :]
    maxp = jnp.max(last_hidden, axis=1)
    avgp = jnp.mean(last_hidden, axis=1)
    feat = jnp.concatenate([maxp, avgp, sent], axis=1)
    z = jnp.tanh(feat @ w1 + b1)
    return z @ w2 + b2


if __name__ == "__main__":
    B, S, H, C, VOCAB = 2, 8, 32, 4, 100

    key = jax.random.PRNGKey(0)
    k = jax.random.split(key, 8)

    # Inputs (token ids / mask / segment ids), as the PyTorch forward expects.
    x = jax.random.randint(k[0], (B, S), 0, VOCAB, dtype=jnp.int32)
    mask = jnp.ones((B, S), dtype=jnp.int32)
    token_type_ids = jnp.zeros((B, S), dtype=jnp.int32)

    # Deterministic surrogate-encoder parameters.
    word_emb = jax.random.normal(k[1], (VOCAB, H), jnp.float32) * 0.1
    seg_emb = jax.random.normal(k[2], (2, H), jnp.float32) * 0.1
    pos_emb = jax.random.normal(k[3], (S, H), jnp.float32) * 0.1

    # Head parameters (JAX convention: (in_features, out_features)).
    w1 = jax.random.normal(k[4], (3 * H, H), jnp.float32) * 0.1   # linear1
    b1 = jax.random.normal(k[5], (H,), jnp.float32) * 0.1
    w2 = jax.random.normal(k[6], (H, C), jnp.float32) * 0.1       # linear2
    b2 = jax.random.normal(k[7], (C,), jnp.float32) * 0.1

    last_hidden = surrogate_bert_encoder(x, mask, token_type_ids,
                                         word_emb, seg_emb, pos_emb)

    ref = reference_head(last_hidden, w1, b1, w2, b2)

    # f32 path (exact semantics of the PyTorch module).
    out = bert_fc_head(last_hidden, w1, b1, w2, b2)
    out = jax.block_until_ready(out)
    assert out.shape == (B, C)
    assert jnp.allclose(out, ref, atol=1e-5, rtol=1e-5), "mismatch vs reference"

    # bf16-input path (halves HBM read traffic); looser tolerance expected.
    out_bf16 = bert_fc_head(last_hidden, w1, b1, w2, b2,
                            input_dtype=jnp.bfloat16)
    out_bf16 = jax.block_until_ready(out_bf16)
    assert out_bf16.shape == (B, C)
    assert jnp.allclose(out_bf16, ref, atol=5e-2, rtol=5e-2), "bf16 path mismatch"

    print("KERNEL_OK")
</pallas_src>

<mosaic_0001>
module attributes {stable_mosaic.version = 11 : i64} {
  func.func @_bert_fc_head_kernel(%arg0: i32, %arg1: memref<8x8x32xf32, #tpu.memory_space<vmem>>, %arg2: memref<96x32xf32, #tpu.memory_space<vmem>>, %arg3: memref<1x32xf32, #tpu.memory_space<vmem>>, %arg4: memref<32x128xf32, #tpu.memory_space<vmem>>, %arg5: memref<1x128xf32, #tpu.memory_space<vmem>>, %arg6: memref<8x128xf32, #tpu.memory_space<vmem>>) attributes {dimension_semantics = [#tpu.dimension_semantics<parallel>], iteration_bounds = array<i64: 1>, scalar_prefetch = 0 : i64, scratch_operands = 0 : i64, tpu.core_type = #tpu.core_type<tc>, window_params = [{transform_indices = @transform_0, window_bounds = array<i64: 8, 8, 32>}, {pipeline_mode = #tpu.pipeline_mode<synchronous>, transform_indices = @transform_1, window_bounds = array<i64: 96, 32>}, {pipeline_mode = #tpu.pipeline_mode<synchronous>, transform_indices = @transform_2, window_bounds = array<i64: 1, 32>}, {pipeline_mode = #tpu.pipeline_mode<synchronous>, transform_indices = @transform_3, window_bounds = array<i64: 32, 128>}, {pipeline_mode = #tpu.pipeline_mode<synchronous>, transform_indices = @transform_4, window_bounds = array<i64: 1, 128>}, {transform_indices = @transform_5, window_bounds = array<i64: 8, 128>}]} {
    %c0 = arith.constant 0 : index
    %c0_0 = arith.constant 0 : index
    %c0_1 = arith.constant 0 : index
    %0 = vector.load %arg1[%c0, %c0_0, %c0_1] : memref<8x8x32xf32, #tpu.memory_space<vmem>>, vector<8x8x32xf32>
    %1 = vector.extract_strided_slice %0 {offsets = [0, 0, 0], sizes = [8, 1, 32], strides = [1, 1, 1]} : vector<8x8x32xf32> to vector<8x1x32xf32>
    %2 = vector.shape_cast %1 : vector<8x1x32xf32> to vector<8x32xf32>
    %cst = arith.constant dense<0xFF800000> : vector<8x32xf32>
    %3 = vector.multi_reduction <maximumf>, %0, %cst [1] : vector<8x8x32xf32> to vector<8x32xf32>
    %cst_2 = arith.constant dense<0.000000e+00> : vector<8x32xf32>
    %4 = vector.multi_reduction <add>, %0, %cst_2 [1] : vector<8x8x32xf32> to vector<8x32xf32>
    %cst_3 = arith.constant 8.000000e+00 : f32
    %5 = vector.broadcast %cst_3 : f32 to vector<8x32xf32>
    %6 = arith.divf %4, %5 : vector<8x32xf32>
    %c0_4 = arith.constant 0 : index
    %c0_5 = arith.constant 0 : index
    %7 = vector.load %arg2[%c0_4, %c0_5] : memref<96x32xf32, #tpu.memory_space<vmem>>, vector<32x32xf32>
    %cst_6 = arith.constant dense<0.000000e+00> : vector<8x32xf32>
    %8 = tpu.matmul %3, %7, %cst_6 {dimension_numbers = #tpu.dot_dimension_numbers<[1], [0], [0], [1], [0, 0, 1, 1], [], []>} : vector<8x32xf32>, vector<32x32xf32>, vector<8x32xf32> -> vector<8x32xf32>
    %c32 = arith.constant 32 : index
    %c0_7 = arith.constant 0 : index
    %9 = vector.load %arg2[%c32, %c0_7] : memref<96x32xf32, #tpu.memory_space<vmem>>, vector<32x32xf32>
    %cst_8 = arith.constant dense<0.000000e+00> : vector<8x32xf32>
    %10 = tpu.matmul %6, %9, %cst_8 {dimension_numbers = #tpu.dot_dimension_numbers<[1], [0], [0], [1], [0, 0, 1, 1], [], []>} : vector<8x32xf32>, vector<32x32xf32>, vector<8x32xf32> -> vector<8x32xf32>
    %11 = arith.addf %8, %10 : vector<8x32xf32>
    %c64 = arith.constant 64 : index
    %c0_9 = arith.constant 0 : index
    %12 = vector.load %arg2[%c64, %c0_9] : memref<96x32xf32, #tpu.memory_space<vmem>>, vector<32x32xf32>
    %cst_10 = arith.constant dense<0.000000e+00> : vector<8x32xf32>
    %13 = tpu.matmul %2, %12, %cst_10 {dimension_numbers = #tpu.dot_dimension_numbers<[1], [0], [0], [1], [0, 0, 1, 1], [], []>} : vector<8x32xf32>, vector<32x32xf32>, vector<8x32xf32> -> vector<8x32xf32>
    %14 = arith.addf %11, %13 : vector<8x32xf32>
    %c0_11 = arith.constant 0 : index
    %c0_12 = arith.constant 0 : index
    %15 = vector.load %arg3[%c0_11, %c0_12] : memref<1x32xf32, #tpu.memory_space<vmem>>, vector<1x32xf32>
    %16 = vector.broadcast %15 : vector<1x32xf32> to vector<8x32xf32>
    %17 = arith.addf %14, %16 : vector<8x32xf32>
    %18 = math.tanh %17 : vector<8x32xf32>
    %c0_13 = arith.constant 0 : index
    %c0_14 = arith.constant 0 : index
    %19 = vector.load %arg4[%c0_13, %c0_14] : memref<32x128xf32, #tpu.memory_space<vmem>>, vector<32x128xf32>
    %cst_15 = arith.constant dense<0.000000e+00> : vector<8x128xf32>
    %20 = tpu.matmul %18, %19, %cst_15 {dimension_numbers = #tpu.dot_dimension_numbers<[1], [0], [0], [1], [0, 0, 1, 1], [], []>} : vector<8x32xf32>, vector<32x128xf32>, vector<8x128xf32> -> vector<8x128xf32>
    %c0_16 = arith.constant 0 : index
    %c0_17 = arith.constant 0 : index
    %21 = vector.load %arg5[%c0_16, %c0_17] : memref<1x128xf32, #tpu.memory_space<vmem>>, vector<1x128xf32>
    %22 = vector.broadcast %21 : vector<1x128xf32> to vector<8x128xf32>
    %23 = arith.addf %20, %22 : vector<8x128xf32>
    %c0_18 = arith.constant 0 : index
    %c0_19 = arith.constant 0 : index
    %24 = vector.load %arg6[%c0_18, %c0_19] : memref<8x128xf32, #tpu.memory_space<vmem>>, vector<8x128xf32>
    tpu.vector_store %arg6[%c0_18, %c0_19], %23 {strides = array<i32>} : memref<8x128xf32, #tpu.memory_space<vmem>>, vector<8x128xf32>,
    return
  }
  func.func @transform_0(%arg0: i32) -> (i32, i32, i32) {
    %c0_i32 = arith.constant 0 : i32
    %c0_i32_0 = arith.constant 0 : i32
    %c0_i32_1 = arith.constant 0 : i32
    return %arg0, %c0_i32, %c0_i32_0 : i32, i32, i32
  }
  func.func @transform_1(%arg0: i32) -> (i32, i32) {
    %c0_i32 = arith.constant 0 : i32
    %c0_i32_0 = arith.constant 0 : i32
    %c0_i32_1 = arith.constant 0 : i32
    return %c0_i32, %c0_i32_0 : i32, i32
  }
  func.func @transform_2(%arg0: i32) -> (i32, i32) {
    %c0_i32 = arith.constant 0 : i32
    %c0_i32_0 = arith.constant 0 : i32
    %c0_i32_1 = arith.constant 0 : i32
    return %c0_i32, %c0_i32_0 : i32, i32
  }
  func.func @transform_3(%arg0: i32) -> (i32, i32) {
    %c0_i32 = arith.constant 0 : i32
    %c0_i32_0 = arith.constant 0 : i32
    %c0_i32_1 = arith.constant 0 : i32
    return %c0_i32, %c0_i32_0 : i32, i32
  }
  func.func @transform_4(%arg0: i32) -> (i32, i32) {
    %c0_i32 = arith.constant 0 : i32
    %c0_i32_0 = arith.constant 0 : i32
    %c0_i32_1 = arith.constant 0 : i32
    return %c0_i32, %c0_i32_0 : i32, i32
  }
  func.func @transform_5(%arg0: i32) -> (i32, i32) {
    %c0_i32 = arith.constant 0 : i32
    %c0_i32_0 = arith.constant 0 : i32
    return %arg0, %c0_i32 : i32, i32
  }
}

</mosaic_0001>

<llo_original>
// kernel: tpu_custom_call.1
$region0: #{tpu_custom_call.1}
  #allocation0 [shape = 'u32[]', space=smem, size = 0x4, offset = 0x4, fixed_abs, tag = 'smem constant byte address 0x4 - core index']
  #allocation1 [shape = 'u32[144,128]{1,0:T(1,128)}', space=vmem, size = 0x12000, scoped, tag = 'internal scratch']
  %s0 = inlined_call_operand.vmem [shape: f32[8,8,32], index: 0, kind: input, shape index: {}]
  %s1 = inlined_call_operand.vmem [shape: f32[96,32], index: 1, kind: input, shape index: {}]
  %s2 = inlined_call_operand.vmem [shape: f32[1,32], index: 2, kind: input, shape index: {}]
  %s3 = inlined_call_operand.vmem [shape: f32[32,128], index: 3, kind: input, shape index: {}]
  %s4 = inlined_call_operand.vmem [shape: f32[1,128], index: 4, kind: input, shape index: {}]
  %s5 = inlined_call_operand.hbm [shape: f32[8,128], index: 5, kind: output, shape index: {}]
  %s6 = sld [smem:[#allocation0]]
  $region30: #{tpu_custom_call.1} parent=0
    _
  %s8 = ssub.s32 1, %s6
  %s9 = scalar_select 0, %s8, %s6
  $region1: #{tpu_custom_call.1} parent=0
    #allocation2 [shape = 'u8[4096]{0}', space=vmem, size = 0x1000, scoped, tag = 'output window, operand 0, single buffered']
    #allocation3 [shape = 's32[1]{0}', space=sflag, size = 0x4, scoped, tag = 'scoped memory for tpu_custom_call.1']
    %10 = vsyncpa [#allocation3], 0
    // Predicated region
    $region2: #{tpu_custom_call.1} parent=1 // pred_check
      _
    $region3: #{tpu_custom_call.1} parent=1 // pred_check_branch
      %12 = sbr.rel (0) target = $region5
    $region4: #{tpu_custom_call.1} parent=1 // pred_region
      _
    $region5: #{tpu_custom_call.1} parent=1 // pred_fallthru
      _
    // Predicated region
    $region6: #{tpu_custom_call.1} parent=1 // pred_check
      _
    $region7: #{tpu_custom_call.1} parent=1 // pred_check_branch
      %14 = sbr.rel (0) target = $region9
    $region8: #{tpu_custom_call.1} parent=1 // pred_region
      _
    $region9: #{tpu_custom_call.1} parent=1 // pred_fallthru
      _
    // Predicated region
    $region10: #{tpu_custom_call.1} parent=1 // pred_check
      _
    $region11: #{tpu_custom_call.1} parent=1 // pred_check_branch
      %16 = sbr.rel (0) target = $region13
    $region12: #{tpu_custom_call.1} parent=1 // pred_region
      _
    $region13: #{tpu_custom_call.1} parent=1 // pred_fallthru
      _
    // Predicated region
    $region14: #{tpu_custom_call.1} parent=1 // pred_check
      _
    $region15: #{tpu_custom_call.1} parent=1 // pred_check_branch
      %18 = sbr.rel (0) target = $region17
    $region16: #{tpu_custom_call.1} parent=1 // pred_region
      _
    $region17: #{tpu_custom_call.1} parent=1 // pred_fallthru
      _
    // Predicated region
    $region18: #{tpu_custom_call.1} parent=1 // pred_check
      _
    $region19: #{tpu_custom_call.1} parent=1 // pred_check_branch
      %20 = sbr.rel (0) target = $region21
    $region20: #{tpu_custom_call.1} parent=1 // pred_region
      _
    $region21: #{tpu_custom_call.1} parent=1 // pred_fallthru
      _
    %v21 = vld [vmem:[%s0] sm:$0xff]
    %v22 = vld [vmem:[%s0 + $0x8] sm:$0xff]
    %v23 = vld [vmem:[%s0 + $0x10] sm:$0xff]
    %v24 = vld [vmem:[%s0 + $0x18] sm:$0xff]
    %v25 = vld [vmem:[%s0 + $0x20] sm:$0xff]
    %v26 = vld [vmem:[%s0 + $0x28] sm:$0xff]
    %v27 = vld [vmem:[%s0 + $0x30] sm:$0xff]
    %v28 = vld [vmem:[%s0 + $0x38] sm:$0xff]
    %vm29 = vcmask 261120
    %v30 = vsel %vm29, %v21, -inf
    %v31 = vrot.slane %v30, 4
    %v32 = vmax.f32 %v30, %v31
    %v33 = vrot.slane %v32, 2
    %v34 = vmax.f32 %v32, %v33
    %v35 = vrot.slane %v34, 1
    %v36 = vmax.f32 %v34, %v35
    %v37 = vsel %vm29, %v22, -inf
    %v38 = vrot.slane %v37, 4
    %v39 = vmax.f32 %v37, %v38
    %v40 = vrot.slane %v39, 2
    %v41 = vmax.f32 %v39, %v40
    %v42 = vrot.slane %v41, 1
    %v43 = vmax.f32 %v41, %v42
    %v44 = vsel %vm29, %v23, -inf
    %v45 = vrot.slane %v44, 4
    %v46 = vmax.f32 %v44, %v45
    %v47 = vrot.slane %v46, 2
    %v48 = vmax.f32 %v46, %v47
    %v49 = vrot.slane %v48, 1
    %v50 = vmax.f32 %v48, %v49
    %v51 = vsel %vm29, %v24, -inf
    %v52 = vrot.slane %v51, 4
    %v53 = vmax.f32 %v51, %v52
    %v54 = vrot.slane %v53, 2
    %v55 = vmax.f32 %v53, %v54
    %v56 = vrot.slane %v55, 1
    %v57 = vmax.f32 %v55, %v56
    %v58 = vsel %vm29, %v25, -inf
    %v59 = vrot.slane %v58, 4
    %v60 = vmax.f32 %v58, %v59
    %v61 = vrot.slane %v60, 2
    %v62 = vmax.f32 %v60, %v61
    %v63 = vrot.slane %v62, 1
    %v64 = vmax.f32 %v62, %v63
    %v65 = vsel %vm29, %v26, -inf
    %v66 = vrot.slane %v65, 4
    %v67 = vmax.f32 %v65, %v66
    %v68 = vrot.slane %v67, 2
    %v69 = vmax.f32 %v67, %v68
    %v70 = vrot.slane %v69, 1
    %v71 = vmax.f32 %v69, %v70
    %v72 = vsel %vm29, %v27, -inf
    %v73 = vrot.slane %v72, 4
    %v74 = vmax.f32 %v72, %v73
    %v75 = vrot.slane %v74, 2
    %v76 = vmax.f32 %v74, %v75
    %v77 = vrot.slane %v76, 1
    %v78 = vmax.f32 %v76, %v77
    %v79 = vsel %vm29, %v28, -inf
    %v80 = vrot.slane %v79, 4
    %v81 = vmax.f32 %v79, %v80
    %v82 = vrot.slane %v81, 2
    %v83 = vmax.f32 %v81, %v82
    %v84 = vrot.slane %v83, 1
    %v85 = vmax.f32 %v83, %v84
    %v86 = vsel %vm29, %v21, 0.0
    %v87 = vrot.slane %v86, 4
    %v88 = vadd.f32 %v86, %v87
    %v89 = vrot.slane %v88, 2
    %v90 = vadd.f32 %v88, %v89
    %v91 = vrot.slane %v90, 1
    %v92 = vadd.f32 %v90, %v91
    %v93 = vsel %vm29, %v22, 0.0
    %v94 = vrot.slane %v93, 4
    %v95 = vadd.f32 %v93, %v94
    %v96 = vrot.slane %v95, 2
    %v97 = vadd.f32 %v95, %v96
    %v98 = vrot.slane %v97, 1
    %v99 = vadd.f32 %v97, %v98
    %v100 = vsel %vm29, %v23, 0.0
    %v101 = vrot.slane %v100, 4
    %v102 = vadd.f32 %v100, %v101
    %v103 = vrot.slane %v102, 2
    %v104 = vadd.f32 %v102, %v103
    %v105 = vrot.slane %v104, 1
    %v106 = vadd.f32 %v104, %v105
    %v107 = vsel %vm29, %v24, 0.0
    %v108 = vrot.slane %v107, 4
    %v109 = vadd.f32 %v107, %v108
    %v110 = vrot.slane %v109, 2
    %v111 = vadd.f32 %v109, %v110
    %v112 = vrot.slane %v111, 1
    %v113 = vadd.f32 %v111, %v112
    %v114 = vsel %vm29, %v25, 0.0
    %v115 = vrot.slane %v114, 4
    %v116 = vadd.f32 %v114, %v115
    %v117 = vrot.slane %v116, 2
    %v118 = vadd.f32 %v116, %v117
    %v119 = vrot.slane %v118, 1
    %v120 = vadd.f32 %v118, %v119
    %v121 = vsel %vm29, %v26, 0.0
    %v122 = vrot.slane %v121, 4
    %v123 = vadd.f32 %v121, %v122
    %v124 = vrot.slane %v123, 2
    %v125 = vadd.f32 %v123, %v124
    %v126 = vrot.slane %v125, 1
    %v127 = vadd.f32 %v125, %v126
    %v128 = vsel %vm29, %v27, 0.0
    %v129 = vrot.slane %v128, 4
    %v130 = vadd.f32 %v128, %v129
    %v131 = vrot.slane %v130, 2
    %v132 = vadd.f32 %v130, %v131
    %v133 = vrot.slane %v132, 1
    %v134 = vadd.f32 %v132, %v133
    %v135 = vsel %vm29, %v28, 0.0
    %v136 = vrot.slane %v135, 4
    %v137 = vadd.f32 %v135, %v136
    %v138 = vrot.slane %v137, 2
    %v139 = vadd.f32 %v137, %v138
    %v140 = vrot.slane %v139, 1
    %v141 = vadd.f32 %v139, %v140
    %v142 = vrcp.pop 8.0
    %v143 = vmul.f32 %v92, %v142
    %v144 = vmul.f32 %v99, %v142
    %v145 = vmul.f32 %v106, %v142
    %v146 = vmul.f32 %v113, %v142
    %v147 = vmul.f32 %v120, %v142
    %v148 = vmul.f32 %v127, %v142
    %v149 = vmul.f32 %v134, %v142
    %v150 = vmul.f32 %v141, %v142
    %v151 = vld [vmem:[%s1] sm:$0xff]
    %v152 = vld [vmem:[%s1 + $0x8] sm:$0xff]
    %v153 = vld [vmem:[%s1 + $0x10] sm:$0xff]
    %v154 = vld [vmem:[%s1 + $0x18] sm:$0xff]
    %v155 = vld [vmem:[%s1 + $0x20] sm:$0xff]
    %v156 = vld [vmem:[%s1 + $0x28] sm:$0xff]
    %v157 = vld [vmem:[%s1 + $0x30] sm:$0xff]
    %v158 = vld [vmem:[%s1 + $0x38] sm:$0xff]
    %vm167 = vcmask 1041409
    %v168 = vsel %vm167, %v144, %v143
    %vm169 = vcmask 1042434
    %v170 = vsel %vm169, %v145, %v168
    %vm171 = vcmask 1043459
    %v172 = vsel %vm171, %v146, %v170
    %vm173 = vcmask 1044484
    %v174 = vsel %vm173, %v147, %v172
    %vm175 = vcmask 1045509
    %v176 = vsel %vm175, %v148, %v174
    %vm177 = vcmask 1046534
    %v178 = vsel %vm177, %v149, %v176
    %vm179 = vcmask 1047559
    %v180 = vsel %vm179, %v150, %v178
    %v181 = vsel %vm29, %v180, 0
    %183 = vmatprep.subr.mxu0 0.0
    %184 = vmatpush1.msra.mxu0 0.0
    %185 = vmatprep.subr.mxu0 0.0
    %186 = vmatpush1.msra.mxu0 0.0
    %187 = vmatprep.subr.mxu0 0.0
    %188 = vmatpush1.msra.mxu0 0.0
    %189 = vmatprep.subr.mxu0 0.0
    %190 = vmatpush1.msra.mxu0 0.0
    %191 = vmatprep.subr.mxu0 0.0
    %192 = vmatpush1.msra.mxu0 0.0
    %193 = vmatprep.subr.mxu0 0.0
    %194 = vmatpush1.msra.mxu0 0.0
    %195 = vmatprep.subr.mxu0 0.0
    %196 = vmatpush1.msra.mxu0 0.0
    %197 = vmatprep.subr.mxu0 0.0
    %198 = vmatpush1.msra.mxu0 0.0
    %199 = vmatprep.subr.mxu0 0.0
    %200 = vmatpush1.msra.mxu0 0.0
    %201 = vmatprep.subr.mxu0 0.0
    %202 = vmatpush1.msra.mxu0 0.0
    %203 = vmatprep.subr.mxu0 0.0
    %204 = vmatpush1.msra.mxu0 0.0
    %205 = vmatprep.subr.mxu0 0.0
    %206 = vmatpush1.msra.mxu0 0.0
    %207 = vmatprep.subr.mxu0 0.0
    %208 = vmatpush1.msra.mxu0 %v158
    %209 = vmatprep.subr.mxu0 0.0
    %210 = vmatpush1.msra.mxu0 %v157
    %211 = vmatprep.subr.mxu0 0.0
    %212 = vmatpush1.msra.mxu0 %v156
    %213 = vmatprep.subr.mxu0 0.0
    %214 = vmatpush1.msra.mxu0 %v155
    %215 = vmatprep.subr.mxu0 0.0
    %216 = vmatpush2.msra.mxu0 0.0
    %217 = vmatprep.subr.mxu0 0.0
    %218 = vmatpush2.msra.mxu0 0.0
    %219 = vmatprep.subr.mxu0 0.0
    %220 = vmatpush2.msra.mxu0 0.0
    %221 = vmatprep.subr.mxu0 0.0
    %222 = vmatpush2.msra.mxu0 0.0
    %223 = vmatprep.subr.mxu0 0.0
    %224 = vmatpush2.msra.mxu0 0.0
    %225 = vmatprep.subr.mxu0 0.0
    %226 = vmatpush2.msra.mxu0 0.0
    %227 = vmatprep.subr.mxu0 0.0
    %228 = vmatpush2.msra.mxu0 0.0
    %229 = vmatprep.subr.mxu0 0.0
    %230 = vmatpush2.msra.mxu0 0.0
    %231 = vmatprep.subr.mxu0 0.0
    %232 = vmatpush2.msra.mxu0 0.0
    %233 = vmatprep.subr.mxu0 0.0
    %234 = vmatpush2.msra.mxu0 0.0
    %235 = vmatprep.subr.mxu0 0.0
    %236 = vmatpush2.msra.mxu0 0.0
    %237 = vmatprep.subr.mxu0 0.0
    %238 = vmatpush2.msra.mxu0 0.0
    %239 = vmatprep.subr.mxu0 0.0
    %240 = vmatpush2.msra.mxu0 0.0
    %241 = vmatprep.subr.mxu0 0.0
    %242 = vmatpush2.msra.mxu0 0.0
    %243 = vmatprep.subr.mxu0 0.0
    %244 = vmatpush2.msra.mxu0 0.0
    %245 = vmatprep.subr.mxu0 0.0
    %246 = vmatpush2.msra.mxu0 0.0
    %247 = vmatprep.mubr.f32.mxu0 0.0
    %248 = vmatmul.mubr.f32.gmra.mxu0 %v181
    %v249 = vpop.f32.mrf.mxu0
    %v250 = vadd.f32 0.0, %v249
    %v251 = vpop.f32.mrf.mxu0
    %252 = vdwg.mxu0
    %v261 = vsel %vm167, %v43, %v36
    %v262 = vsel %vm169, %v50, %v261
    %v263 = vsel %vm171, %v57, %v262
    %v264 = vsel %vm173, %v64, %v263
    %v265 = vsel %vm175, %v71, %v264
    %v266 = vsel %vm177, %v78, %v265
    %v267 = vsel %vm179, %v85, %v266
    %v268 = vsel %vm29, %v267, 0
    %270 = vmatprep.subr.mxu0 0.0
    %271 = vmatpush1.msra.mxu0 0.0
    %272 = vmatprep.subr.mxu0 0.0
    %273 = vmatpush1.msra.mxu0 0.0
    %274 = vmatprep.subr.mxu0 0.0
    %275 = vmatpush1.msra.mxu0 0.0
    %276 = vmatprep.subr.mxu0 0.0
    %277 = vmatpush1.msra.mxu0 0.0
    %278 = vmatprep.subr.mxu0 0.0
    %279 = vmatpush1.msra.mxu0 0.0
    %280 = vmatprep.subr.mxu0 0.0
    %281 = vmatpush1.msra.mxu0 0.0
    %282 = vmatprep.subr.mxu0 0.0
    %283 = vmatpush1.msra.mxu0 0.0
    %284 = vmatprep.subr.mxu0 0.0
    %285 = vmatpush1.msra.mxu0 0.0
    %286 = vmatprep.subr.mxu0 0.0
    %287 = vmatpush1.msra.mxu0 0.0
    %288 = vmatprep.subr.mxu0 0.0
    %289 = vmatpush1.msra.mxu0 0.0
    %290 = vmatprep.subr.mxu0 0.0
    %291 = vmatpush1.msra.mxu0 0.0
    %292 = vmatprep.subr.mxu0 0.0
    %293 = vmatpush1.msra.mxu0 0.0
    %294 = vmatprep.subr.mxu0 0.0
    %295 = vmatpush1.msra.mxu0 %v154
    %296 = vmatprep.subr.mxu0 0.0
    %297 = vmatpush1.msra.mxu0 %v153
    %298 = vmatprep.subr.mxu0 0.0
    %299 = vmatpush1.msra.mxu0 %v152
    %300 = vmatprep.subr.mxu0 0.0
    %301 = vmatpush1.msra.mxu0 %v151
    %302 = vmatprep.subr.mxu0 0.0
    %303 = vmatpush2.msra.mxu0 0.0
    %304 = vmatprep.subr.mxu0 0.0
    %305 = vmatpush2.msra.mxu0 0.0
    %306 = vmatprep.subr.mxu0 0.0
    %307 = vmatpush2.msra.mxu0 0.0
    %308 = vmatprep.subr.mxu0 0.0
    %309 = vmatpush2.msra.mxu0 0.0
    %310 = vmatprep.subr.mxu0 0.0
    %311 = vmatpush2.msra.mxu0 0.0
    %312 = vmatprep.subr.mxu0 0.0
    %313 = vmatpush2.msra.mxu0 0.0
    %314 = vmatprep.subr.mxu0 0.0
    %315 = vmatpush2.msra.mxu0 0.0
    %316 = vmatprep.subr.mxu0 0.0
    %317 = vmatpush2.msra.mxu0 0.0
    %318 = vmatprep.subr.mxu0 0.0
    %319 = vmatpush2.msra.mxu0 0.0
    %320 = vmatprep.subr.mxu0 0.0
    %321 = vmatpush2.msra.mxu0 0.0
    %322 = vmatprep.subr.mxu0 0.0
    %323 = vmatpush2.msra.mxu0 0.0
    %324 = vmatprep.subr.mxu0 0.0
    %325 = vmatpush2.msra.mxu0 0.0
    %326 = vmatprep.subr.mxu0 0.0
    %327 = vmatpush2.msra.mxu0 0.0
    %328 = vmatprep.subr.mxu0 0.0
    %329 = vmatpush2.msra.mxu0 0.0
    %330 = vmatprep.subr.mxu0 0.0
    %331 = vmatpush2.msra.mxu0 0.0
    %332 = vmatprep.subr.mxu0 0.0
    %333 = vmatpush2.msra.mxu0 0.0
    %334 = vmatprep.mubr.f32.mxu0 0.0
    %335 = vmatmul.mubr.f32.gmra.mxu0 %v268
    %v336 = vpop.f32.mrf.mxu0
    %v337 = vadd.f32 %v250, %v336
    %v338 = vpop.f32.mrf.mxu0
    %339 = vdwg.mxu0
    %v340 = vld [vmem:[%s1 + $0x40] sm:$0xff]
    %v341 = vld [vmem:[%s1 + $0x48] sm:$0xff]
    %v342 = vld [vmem:[%s1 + $0x50] sm:$0xff]
    %v343 = vld [vmem:[%s1 + $0x58] sm:$0xff]
    %v352 = vrot.slane %v22, 7
    %v353 = vsel %vm167, %v352, %v21
    %v354 = vrot.slane %v23, 6
    %v355 = vsel %vm169, %v354, %v353
    %v356 = vrot.slane %v24, 5
    %v357 = vsel %vm171, %v356, %v355
    %v358 = vrot.slane %v25, 4
    %v359 = vsel %vm173, %v358, %v357
    %v360 = vrot.slane %v26, 3
    %v361 = vsel %vm175, %v360, %v359
    %v362 = vrot.slane %v27, 2
    %v363 = vsel %vm177, %v362, %v361
    %v364 = vrot.slane %v28, 1
    %v365 = vsel %vm179, %v364, %v363
    %v366 = vsel %vm29, %v365, 0
    %368 = vmatprep.subr.mxu0 0.0
    %369 = vmatpush1.msra.mxu0 0.0
    %370 = vmatprep.subr.mxu0 0.0
    %371 = vmatpush1.msra.mxu0 0.0
    %372 = vmatprep.subr.mxu0 0.0
    %373 = vmatpush1.msra.mxu0 0.0
    %374 = vmatprep.subr.mxu0 0.0
    %375 = vmatpush1.msra.mxu0 0.0
    %376 = vmatprep.subr.mxu0 0.0
    %377 = vmatpush1.msra.mxu0 0.0
    %378 = vmatprep.subr.mxu0 0.0
    %379 = vmatpush1.msra.mxu0 0.0
    %380 = vmatprep.subr.mxu0 0.0
    %381 = vmatpush1.msra.mxu0 0.0
    %382 = vmatprep.subr.mxu0 0.0
    %383 = vmatpush1.msra.mxu0 0.0
    %384 = vmatprep.subr.mxu0 0.0
    %385 = vmatpush1.msra.mxu0 0.0
    %386 = vmatprep.subr.mxu0 0.0
    %387 = vmatpush1.msra.mxu0 0.0
    %388 = vmatprep.subr.mxu0 0.0
    %389 = vmatpush1.msra.mxu0 0.0
    %390 = vmatprep.subr.mxu0 0.0
    %391 = vmatpush1.msra.mxu0 0.0
    %392 = vmatprep.subr.mxu0 0.0
    %393 = vmatpush1.msra.mxu0 %v343
    %394 = vmatprep.subr.mxu0 0.0
    %395 = vmatpush1.msra.mxu0 %v342
    %396 = vmatprep.subr.mxu0 0.0
    %397 = vmatpush1.msra.mxu0 %v341
    %398 = vmatprep.subr.mxu0 0.0
    %399 = vmatpush1.msra.mxu0 %v340
    %400 = vmatprep.subr.mxu0 0.0
    %401 = vmatpush2.msra.mxu0 0.0
    %402 = vmatprep.subr.mxu0 0.0
    %403 = vmatpush2.msra.mxu0 0.0
    %404 = vmatprep.subr.mxu0 0.0
    %405 = vmatpush2.msra.mxu0 0.0
    %406 = vmatprep.subr.mxu0 0.0
    %407 = vmatpush2.msra.mxu0 0.0
    %408 = vmatprep.subr.mxu0 0.0
    %409 = vmatpush2.msra.mxu0 0.0
    %410 = vmatprep.subr.mxu0 0.0
    %411 = vmatpush2.msra.mxu0 0.0
    %412 = vmatprep.subr.mxu0 0.0
    %413 = vmatpush2.msra.mxu0 0.0
    %414 = vmatprep.subr.mxu0 0.0
    %415 = vmatpush2.msra.mxu0 0.0
    %416 = vmatprep.subr.mxu0 0.0
    %417 = vmatpush2.msra.mxu0 0.0
    %418 = vmatprep.subr.mxu0 0.0
    %419 = vmatpush2.msra.mxu0 0.0
    %420 = vmatprep.subr.mxu0 0.0
    %421 = vmatpush2.msra.mxu0 0.0
    %422 = vmatprep.subr.mxu0 0.0
    %423 = vmatpush2.msra.mxu0 0.0
    %424 = vmatprep.subr.mxu0 0.0
    %425 = vmatpush2.msra.mxu0 0.0
    %426 = vmatprep.subr.mxu0 0.0
    %427 = vmatpush2.msra.mxu0 0.0
    %428 = vmatprep.subr.mxu0 0.0
    %429 = vmatpush2.msra.mxu0 0.0
    %430 = vmatprep.subr.mxu0 0.0
    %431 = vmatpush2.msra.mxu0 0.0
    %432 = vmatprep.mubr.f32.mxu0 0.0
    %433 = vmatmul.mubr.f32.gmra.mxu0 %v366
    %v434 = vpop.f32.mrf.mxu0
    %v435 = vadd.f32 0.0, %v434
    %v436 = vpop.f32.mrf.mxu0
    %437 = vdwg.mxu0
    %v438 = vadd.f32 %v337, %v435
    %v439 = vld [vmem:[%s2] sm:$0x1]
    %v441 = vlaneseq
    %v442 = vshrl.u32 %v441, 7
    %v443 = vsub.s32 0, %v442
    %v444 = vrot.slane %v439, %v443
    %v446 = vadd.f32 %v438, %v444
    %v447 = vtanh.pop %v446
    %v448 = vld [vmem:[%s3] sm:$0xff]
    %v449 = vld [vmem:[%s3 + $0x8] sm:$0xff]
    %v450 = vld [vmem:[%s3 + $0x10] sm:$0xff]
    %v451 = vld [vmem:[%s3 + $0x18] sm:$0xff]
    %v452 = vld [vmem:[%s4] sm:$0x1]
    %v454 = vlaneseq
    %v455 = vshrl.u32 %v454, 7
    %v456 = vsub.s32 0, %v455
    %v457 = vrot.slane %v452, %v456
    %v460 = vsel %vm29, %v447, 0
    %462 = vmatprep.subr.mxu0 0.0
    %463 = vmatpush1.msra.mxu0 0.0
    %464 = vmatprep.subr.mxu0 0.0
    %465 = vmatpush1.msra.mxu0 0.0
    %466 = vmatprep.subr.mxu0 0.0
    %467 = vmatpush1.msra.mxu0 0.0
    %468 = vmatprep.subr.mxu0 0.0
    %469 = vmatpush1.msra.mxu0 0.0
    %470 = vmatprep.subr.mxu0 0.0
    %471 = vmatpush1.msra.mxu0 0.0
    %472 = vmatprep.subr.mxu0 0.0
    %473 = vmatpush1.msra.mxu0 0.0
    %474 = vmatprep.subr.mxu0 0.0
    %475 = vmatpush1.msra.mxu0 0.0
    %476 = vmatprep.subr.mxu0 0.0
    %477 = vmatpush1.msra.mxu0 0.0
    %478 = vmatprep.subr.mxu0 0.0
    %479 = vmatpush1.msra.mxu0 0.0
    %480 = vmatprep.subr.mxu0 0.0
    %481 = vmatpush1.msra.mxu0 0.0
    %482 = vmatprep.subr.mxu0 0.0
    %483 = vmatpush1.msra.mxu0 0.0
    %484 = vmatprep.subr.mxu0 0.0
    %485 = vmatpush1.msra.mxu0 0.0
    %486 = vmatprep.subr.mxu0 0.0
    %487 = vmatpush1.msra.mxu0 %v451
    %488 = vmatprep.subr.mxu0 0.0
    %489 = vmatpush1.msra.mxu0 %v450
    %490 = vmatprep.subr.mxu0 0.0
    %491 = vmatpush1.msra.mxu0 %v449
    %492 = vmatprep.subr.mxu0 0.0
    %493 = vmatpush1.msra.mxu0 %v448
    %494 = vmatprep.subr.mxu0 0.0
    %495 = vmatpush2.msra.mxu0 0.0
    %496 = vmatprep.subr.mxu0 0.0
    %497 = vmatpush2.msra.mxu0 0.0
    %498 = vmatprep.subr.mxu0 0.0
    %499 = vmatpush2.msra.mxu0 0.0
    %500 = vmatprep.subr.mxu0 0.0
    %501 = vmatpush2.msra.mxu0 0.0
    %502 = vmatprep.subr.mxu0 0.0
    %503 = vmatpush2.msra.mxu0 0.0
    %504 = vmatprep.subr.mxu0 0.0
    %505 = vmatpush2.msra.mxu0 0.0
    %506 = vmatprep.subr.mxu0 0.0
    %507 = vmatpush2.msra.mxu0 0.0
    %508 = vmatprep.subr.mxu0 0.0
    %509 = vmatpush2.msra.mxu0 0.0
    %510 = vmatprep.subr.mxu0 0.0
    %511 = vmatpush2.msra.mxu0 0.0
    %512 = vmatprep.subr.mxu0 0.0
    %513 = vmatpush2.msra.mxu0 0.0
    %514 = vmatprep.subr.mxu0 0.0
    %515 = vmatpush2.msra.mxu0 0.0
    %516 = vmatprep.subr.mxu0 0.0
    %517 = vmatpush2.msra.mxu0 0.0
    %518 = vmatprep.subr.mxu0 0.0
    %519 = vmatpush2.msra.mxu0 0.0
    %520 = vmatprep.subr.mxu0 0.0
    %521 = vmatpush2.msra.mxu0 0.0
    %522 = vmatprep.subr.mxu0 0.0
    %523 = vmatpush2.msra.mxu0 0.0
    %524 = vmatprep.subr.mxu0 0.0
    %525 = vmatpush2.msra.mxu0 0.0
    %526 = vmatprep.mubr.f32.mxu0 0.0
    %527 = vmatmul.mubr.f32.gmra.mxu0 %v460
    %v528 = vpop.f32.mrf.mxu0
    %v529 = vadd.f32 %v457, %v528
    %v530 = vpop.f32.mrf.mxu0
    %531 = vdwg.mxu0
    %532 = vst [vmem:[#allocation2] sm:$0xff] %v529
    // Predicated region
    $region22: #{tpu_custom_call.1} parent=1 // pred_check
      _
    $region23: #{tpu_custom_call.1} parent=1 // pred_check_branch
      %534 = sbr.rel (0) target = $region25
    $region24: #{tpu_custom_call.1} parent=1 // pred_region
      %s536 = ssub.s32 128, 128
      %537 = vsyncadd [#allocation3], %s536
      %s539 = sshll.u32 [#allocation2], 4
      %s540 = int_to_ptr.vmem [resolvable:$true] %s539
      %542 = dma.vmem_to_hbm [thread:$0]  %s540, 128, %s5, [#allocation3]
    $region25: #{tpu_custom_call.1} parent=1 // pred_fallthru
      _
    // Predicated region
    $region26: #{tpu_custom_call.1} parent=1 // pred_check
      _
    $region27: #{tpu_custom_call.1} parent=1 // pred_check_branch
      %544 = sbr.rel (0) target = $region29
    $region28: #{tpu_custom_call.1} parent=1 // pred_region
      %545 = dma.done [#allocation3], 128
    $region29: #{tpu_custom_call.1} parent=1 // pred_fallthru
      _
    %546 = vsyncpa [#allocation3], 1

</llo_original>
